<compile_context>
chip_gen: v7x
topology: tpu7x:2x2x1
jax: 0.10.0
libtpu: 0.0.40
codegen_flags: <defaults>
</compile_context>

<pallas_src>
import functools

import jax
import jax.numpy as jnp
from jax.experimental import pallas as pl
from jax.experimental.pallas import tpu as pltpu


# ---------------- config (deterministic, stands in for `cfgs`) --------------
class Cfgs:
    beta = 0.5          # SmoothL1 beta
    reduction = "mean"  # 'mean' or 'sum' supported
    lamda = 2.0


_CHUNK = 32  # in-kernel row chunk: matches bool(i8) sublane packing (32 rows)


def _cdiv(a, b):
    return (a + b - 1) // b


def _round_up(a, b):
    return _cdiv(a, b) * b


# ------------------------------ Pallas kernel -------------------------------
def _huber_kernel(feat_ref, mask_ref, true_ref, out_ref, sum_acc, cnt_acc, *,
                  beta, lamda, n_rows, n_cols, tile_m, tile_n,
                  ragged_m, ragged_n):
    i = pl.program_id(0)
    j = pl.program_id(1)

    # (8, tile_n) accumulators are resident across the j (reduction) axis.
    @pl.when(j == 0)
    def _():
        sum_acc[...] = jnp.zeros_like(sum_acc)
        cnt_acc[...] = jnp.zeros_like(cnt_acc)

    # Hoisted ragged-edge helpers (compile-time gated: zero cost when the
    # array shape is a tile multiple).
    if ragged_n:
        col_ok = jax.lax.broadcasted_iota(jnp.int32, (_CHUNK, tile_n), 1) < (
            n_cols - j * tile_n)
    if ragged_m:
        sub_idx = jax.lax.broadcasted_iota(jnp.int32, (_CHUNK, tile_n), 0)
        row_base = i * tile_m

    s_part = jnp.zeros((8, tile_n), jnp.float32)
    c_part = jnp.zeros((8, tile_n), jnp.float32)

    # Strip-mine the (tile_m, tile_n) block in 32-row chunks: big DMA block,
    # small VMEM temporaries, register-resident (8, tile_n) partials.
    for r0 in range(0, tile_m, _CHUNK):
        r1 = r0 + _CHUNK
        x = feat_ref[r0:r1, :].astype(jnp.float32) * lamda
        t = true_ref[r0:r1, :].astype(jnp.float32)
        mb = mask_ref[r0:r1, :]
        if ragged_m:
            mb = jnp.logical_and(mb, sub_idx < (n_rows - row_base - r0))
        if ragged_n:
            mb = jnp.logical_and(mb, col_ok)

        d = jnp.abs(x - t)
        dmin = jnp.minimum(d, beta)
        # Branch-free Huber: dmin*(2d - dmin) == 2*beta*SmoothL1(d); the
        # 1/(2*beta) scale is applied once on the final scalar sum.
        raw = dmin * (d + d - dmin)
        elem = jnp.where(mb, raw, 0.0)     # where() guards OOB garbage (NaN/Inf)
        cntf = mb.astype(jnp.float32)

        # Sublane-group fold (_CHUNK, tile_n) -> (8, tile_n): pure vreg adds.
        for g in range(0, _CHUNK, 8):
            s_part = s_part + elem[g:g + 8, :]
            c_part = c_part + cntf[g:g + 8, :]

    sum_acc[...] += s_part
    cnt_acc[...] += c_part

    # In-kernel finalize: lane-group fold (8, tile_n) -> (8, 128), once per
    # row-of-blocks; emit a tiny lane-dense (1, 2, 8, 128) output block.
    @pl.when(j == pl.num_programs(1) - 1)
    def _():
        s = sum_acc[:, 0:128]
        c = cnt_acc[:, 0:128]
        for k in range(1, tile_n // 128):
            s = s + sum_acc[:, k * 128:(k + 1) * 128]
            c = c + cnt_acc[:, k * 128:(k + 1) * 128]
        out_ref[0, 0, :, :] = s
        out_ref[0, 1, :, :] = c


# ------------------------------ wrapper --------------------------------------
def huber_loss(feat_dist_matrix, positive_masks, true_dist_matrix, cfgs=Cfgs,
               tile_m=None, tile_n=None):
    assert feat_dist_matrix.shape == true_dist_matrix.shape == positive_masks.shape
    N, M = feat_dist_matrix.shape
    beta = float(cfgs.beta)
    lamda = float(cfgs.lamda)
    # TODO(synk): beta == 0 means pure L1 in torch's SmoothL1Loss; not handled.
    assert beta > 0.0

    if tile_n is None:
        tile_n = min(1024, _round_up(M, 128))
    if tile_m is None:
        tile_m = min(1024, _round_up(N, 32))
        # v7x megacore: make sure the 'parallel' i-axis has >= 2 row-blocks
        # whenever N allows, so both TensorCores get work.
        if _cdiv(N, tile_m) < 2 and N > 32:
            tile_m = _round_up(_cdiv(N, 2), 32)
    assert tile_m % 32 == 0 and tile_n % 128 == 0   # bool min tile is (32, 128)

    grid_m, grid_n = _cdiv(N, tile_m), _cdiv(M, tile_n)
    ragged_m = (N % tile_m) != 0
    ragged_n = (M % tile_n) != 0

    kernel = functools.partial(
        _huber_kernel, beta=beta, lamda=lamda, n_rows=N, n_cols=M,
        tile_m=tile_m, tile_n=tile_n, ragged_m=ragged_m, ragged_n=ragged_n)

    tile_spec = pl.BlockSpec((tile_m, tile_n), lambda i, j: (i, j))
    out_spec = pl.BlockSpec((1, 2, 8, 128), lambda i, j: (i, 0, 0, 0))
    out_shape = jax.ShapeDtypeStruct((grid_m, 2, 8, 128), jnp.float32)

    parts = pl.pallas_call(
        kernel,
        out_shape=out_shape,
        grid_spec=pltpu.PrefetchScalarGridSpec(
            num_scalar_prefetch=0,
            grid=(grid_m, grid_n),
            in_specs=[tile_spec, tile_spec, tile_spec],
            out_specs=out_spec,
            scratch_shapes=[pltpu.VMEM((8, tile_n), jnp.float32),
                            pltpu.VMEM((8, tile_n), jnp.float32)],
        ),
        compiler_params=pltpu.CompilerParams(
            dimension_semantics=("parallel", "arbitrary"),
            vmem_limit_bytes=40 * 1024 * 1024),
        cost_estimate=pl.CostEstimate(
            flops=12 * N * M,
            transcendentals=0,
            bytes_accessed=9 * N * M + grid_m * 2 * 8 * 128 * 4),
    )(feat_dist_matrix, positive_masks, true_dist_matrix)

    # Single tiny glue reduction over the (grid_m, 2, 8, 128) partials.
    tot = jnp.sum(parts, axis=(0, 2, 3))            # -> (2,) [raw_sum, count]
    raw_sum, count = tot[0], tot[1]
    smooth_sum = raw_sum * (0.5 / beta)             # undo the 2*beta factor

    if cfgs.reduction == "mean":
        # NOTE: count == 0 (no positives) yields NaN, matching torch's
        # SmoothL1Loss('mean') on an empty masked_select result.
        smoothl1 = smooth_sum / count
    elif cfgs.reduction == "sum":
        smoothl1 = smooth_sum
    else:
        # TODO(synk): reduction='none' would return a ragged masked vector
        # (data-dependent length) which has no static-shape Pallas equivalent.
        raise NotImplementedError(cfgs.reduction)

    return smoothl1 * beta


# ------------------------------ reference ------------------------------------
def huber_loss_ref(feat, mask, true, cfgs=Cfgs):
    x = feat.astype(jnp.float32) * cfgs.lamda
    t = true.astype(jnp.float32)
    d = jnp.abs(x - t)
    elem = jnp.where(d < cfgs.beta, 0.5 * d * d / cfgs.beta, d - 0.5 * cfgs.beta)
    m = mask.astype(jnp.float32)
    if cfgs.reduction == "mean":
        s = jnp.sum(elem * m) / jnp.sum(m)
    else:
        s = jnp.sum(elem * m)
    return s * cfgs.beta


# ------------------------------ main ------------------------------------------
if __name__ == "__main__":
    key = jax.random.PRNGKey(0)
    k1, k2, k3 = jax.random.split(key, 3)

    N, M = 128, 256  # small pairwise-distance-matrix shape
    feat_dist_matrix = jax.random.uniform(k1, (N, M), dtype=jnp.float32) * 2.0
    true_dist_matrix = jax.random.uniform(k2, (N, M), dtype=jnp.float32) * 2.0
    positive_masks = jax.random.uniform(k3, (N, M)) > 0.5  # boolean mask

    ref = huber_loss_ref(feat_dist_matrix, positive_masks, true_dist_matrix)

    # Default tiling (grid_m forced >= 2 for the parallel axis).
    out = jax.block_until_ready(
        huber_loss(feat_dist_matrix, positive_masks, true_dist_matrix))
    assert jnp.allclose(out, ref, rtol=1e-5, atol=1e-5), (out, ref)

    # Forced small tiles: multi-step grid / accumulator / finalize path.
    out2 = jax.block_until_ready(
        huber_loss(feat_dist_matrix, positive_masks, true_dist_matrix,
                   tile_m=32, tile_n=128))
    assert jnp.allclose(out2, ref, rtol=1e-5, atol=1e-5), (out2, ref)

    # Ragged (non-tile-multiple) shape: exercises the in-kernel row/col edge
    # masking that replaced the jnp.pad fallback.
    Nr, Mr = 100, 200
    feat_r = feat_dist_matrix[:Nr, :Mr]
    true_r = true_dist_matrix[:Nr, :Mr]
    mask_r = positive_masks[:Nr, :Mr]
    ref_r = huber_loss_ref(feat_r, mask_r, true_r)

    out_r = jax.block_until_ready(huber_loss(feat_r, mask_r, true_r))
    assert jnp.allclose(out_r, ref_r, rtol=1e-5, atol=1e-5), (out_r, ref_r)

    out_r2 = jax.block_until_ready(
        huber_loss(feat_r, mask_r, true_r, tile_m=32, tile_n=128))
    assert jnp.allclose(out_r2, ref_r, rtol=1e-5, atol=1e-5), (out_r2, ref_r)

    print("KERNEL_OK")
</pallas_src>

<mosaic_0001>
module attributes {stable_mosaic.version = 11 : i64} {
  func.func @_huber_kernel(%arg0: i32, %arg1: i32, %arg2: memref<64x256xf32, #tpu.memory_space<vmem>>, %arg3: memref<64x256xi32, #tpu.memory_space<vmem>>, %arg4: memref<64x256xf32, #tpu.memory_space<vmem>>, %arg5: memref<1x2x8x128xf32, #tpu.memory_space<vmem>>, %arg6: memref<8x256xf32, #tpu.memory_space<vmem>>, %arg7: memref<8x256xf32, #tpu.memory_space<vmem>>) attributes {dimension_semantics = [#tpu.dimension_semantics<parallel>, #tpu.dimension_semantics<arbitrary>], iteration_bounds = array<i64: 2, 1>, scalar_prefetch = 0 : i64, scratch_operands = 2 : i64, tpu.core_type = #tpu.core_type<tc>, window_params = [{transform_indices = @transform_0, window_bounds = array<i64: 64, 256>}, {transform_indices = @transform_1, window_bounds = array<i64: 64, 256>}, {transform_indices = @transform_2, window_bounds = array<i64: 64, 256>}, {transform_indices = @transform_3, window_bounds = array<i64: 1, 2, 8, 128>}]} {
    %c0_i32 = arith.constant 0 : i32
    %0 = arith.cmpi eq, %arg1, %c0_i32 : i32
    %1 = arith.extui %0 : i1 to i32
    %c0_i32_0 = arith.constant 0 : i32
    %2 = arith.cmpi ne, %1, %c0_i32_0 : i32
    scf.if %2 {
      %cst_30 = arith.constant 0.000000e+00 : f32
      %80 = vector.broadcast %cst_30 : f32 to vector<8x256xf32>
      %c0_31 = arith.constant 0 : index
      %c0_32 = arith.constant 0 : index
      %81 = vector.load %arg6[%c0_31, %c0_32] : memref<8x256xf32, #tpu.memory_space<vmem>>, vector<8x256xf32>
      tpu.vector_store %arg6[%c0_31, %c0_32], %80 {strides = array<i32>} : memref<8x256xf32, #tpu.memory_space<vmem>>, vector<8x256xf32>,
      %cst_33 = arith.constant 0.000000e+00 : f32
      %82 = vector.broadcast %cst_33 : f32 to vector<8x256xf32>
      %c0_34 = arith.constant 0 : index
      %c0_35 = arith.constant 0 : index
      %83 = vector.load %arg7[%c0_34, %c0_35] : memref<8x256xf32, #tpu.memory_space<vmem>>, vector<8x256xf32>
      tpu.vector_store %arg7[%c0_34, %c0_35], %82 {strides = array<i32>} : memref<8x256xf32, #tpu.memory_space<vmem>>, vector<8x256xf32>,
    } else {
    }
    %cst = arith.constant 0.000000e+00 : f32
    %3 = vector.broadcast %cst : f32 to vector<8x256xf32>
    %cst_1 = arith.constant 0.000000e+00 : f32
    %4 = vector.broadcast %cst_1 : f32 to vector<8x256xf32>
    %c0 = arith.constant 0 : index
    %c0_2 = arith.constant 0 : index
    %5 = vector.load %arg2[%c0, %c0_2] : memref<64x256xf32, #tpu.memory_space<vmem>>, vector<32x256xf32>
    %cst_3 = arith.constant 2.000000e+00 : f32
    %6 = vector.broadcast %cst_3 : f32 to vector<32x256xf32>
    %7 = arith.mulf %5, %6 : vector<32x256xf32>
    %c0_4 = arith.constant 0 : index
    %c0_5 = arith.constant 0 : index
    %8 = vector.load %arg4[%c0_4, %c0_5] : memref<64x256xf32, #tpu.memory_space<vmem>>, vector<32x256xf32>
    %c0_6 = arith.constant 0 : index
    %c0_7 = arith.constant 0 : index
    %9 = vector.load %arg3[%c0_6, %c0_7] : memref<64x256xi32, #tpu.memory_space<vmem>>, vector<32x256xi32>
    %cst_8 = arith.constant dense<0> : vector<32x256xi32>
    %10 = arith.cmpi ne, %9, %cst_8 : vector<32x256xi32>
    %11 = arith.subf %7, %8 : vector<32x256xf32>
    %12 = math.absf %11 : vector<32x256xf32>
    %cst_9 = arith.constant 5.000000e-01 : f32
    %13 = vector.broadcast %cst_9 : f32 to vector<32x256xf32>
    %14 = arith.minimumf %12, %13 : vector<32x256xf32>
    %15 = arith.addf %12, %12 : vector<32x256xf32>
    %16 = arith.subf %15, %14 : vector<32x256xf32>
    %17 = arith.mulf %14, %16 : vector<32x256xf32>
    %cst_10 = arith.constant 0.000000e+00 : f32
    %18 = vector.broadcast %cst_10 : f32 to vector<32x256xf32>
    %19 = arith.select %10, %17, %18 : vector<32x256xi1>, vector<32x256xf32>
    %20 = arith.extui %10 : vector<32x256xi1> to vector<32x256xi32>
    %21 = arith.sitofp %20 : vector<32x256xi32> to vector<32x256xf32>
    %22 = vector.extract_strided_slice %19 {offsets = [0, 0], sizes = [8, 256], strides = [1, 1]} : vector<32x256xf32> to vector<8x256xf32>
    %23 = arith.addf %3, %22 : vector<8x256xf32>
    %24 = vector.extract_strided_slice %21 {offsets = [0, 0], sizes = [8, 256], strides = [1, 1]} : vector<32x256xf32> to vector<8x256xf32>
    %25 = arith.addf %4, %24 : vector<8x256xf32>
    %26 = vector.extract_strided_slice %19 {offsets = [8, 0], sizes = [8, 256], strides = [1, 1]} : vector<32x256xf32> to vector<8x256xf32>
    %27 = arith.addf %23, %26 : vector<8x256xf32>
    %28 = vector.extract_strided_slice %21 {offsets = [8, 0], sizes = [8, 256], strides = [1, 1]} : vector<32x256xf32> to vector<8x256xf32>
    %29 = arith.addf %25, %28 : vector<8x256xf32>
    %30 = vector.extract_strided_slice %19 {offsets = [16, 0], sizes = [8, 256], strides = [1, 1]} : vector<32x256xf32> to vector<8x256xf32>
    %31 = arith.addf %27, %30 : vector<8x256xf32>
    %32 = vector.extract_strided_slice %21 {offsets = [16, 0], sizes = [8, 256], strides = [1, 1]} : vector<32x256xf32> to vector<8x256xf32>
    %33 = arith.addf %29, %32 : vector<8x256xf32>
    %34 = vector.extract_strided_slice %19 {offsets = [24, 0], sizes = [8, 256], strides = [1, 1]} : vector<32x256xf32> to vector<8x256xf32>
    %35 = arith.addf %31, %34 : vector<8x256xf32>
    %36 = vector.extract_strided_slice %21 {offsets = [24, 0], sizes = [8, 256], strides = [1, 1]} : vector<32x256xf32> to vector<8x256xf32>
    %37 = arith.addf %33, %36 : vector<8x256xf32>
    %c32 = arith.constant 32 : index
    %c0_11 = arith.constant 0 : index
    %38 = vector.load %arg2[%c32, %c0_11] : memref<64x256xf32, #tpu.memory_space<vmem>>, vector<32x256xf32>
    %cst_12 = arith.constant 2.000000e+00 : f32
    %39 = vector.broadcast %cst_12 : f32 to vector<32x256xf32>
    %40 = arith.mulf %38, %39 : vector<32x256xf32>
    %c32_13 = arith.constant 32 : index
    %c0_14 = arith.constant 0 : index
    %41 = vector.load %arg4[%c32_13, %c0_14] : memref<64x256xf32, #tpu.memory_space<vmem>>, vector<32x256xf32>
    %c32_15 = arith.constant 32 : index
    %c0_16 = arith.constant 0 : index
    %42 = vector.load %arg3[%c32_15, %c0_16] : memref<64x256xi32, #tpu.memory_space<vmem>>, vector<32x256xi32>
    %cst_17 = arith.constant dense<0> : vector<32x256xi32>
    %43 = arith.cmpi ne, %42, %cst_17 : vector<32x256xi32>
    %44 = arith.subf %40, %41 : vector<32x256xf32>
    %45 = math.absf %44 : vector<32x256xf32>
    %cst_18 = arith.constant 5.000000e-01 : f32
    %46 = vector.broadcast %cst_18 : f32 to vector<32x256xf32>
    %47 = arith.minimumf %45, %46 : vector<32x256xf32>
    %48 = arith.addf %45, %45 : vector<32x256xf32>
    %49 = arith.subf %48, %47 : vector<32x256xf32>
    %50 = arith.mulf %47, %49 : vector<32x256xf32>
    %cst_19 = arith.constant 0.000000e+00 : f32
    %51 = vector.broadcast %cst_19 : f32 to vector<32x256xf32>
    %52 = arith.select %43, %50, %51 : vector<32x256xi1>, vector<32x256xf32>
    %53 = arith.extui %43 : vector<32x256xi1> to vector<32x256xi32>
    %54 = arith.sitofp %53 : vector<32x256xi32> to vector<32x256xf32>
    %55 = vector.extract_strided_slice %52 {offsets = [0, 0], sizes = [8, 256], strides = [1, 1]} : vector<32x256xf32> to vector<8x256xf32>
    %56 = arith.addf %35, %55 : vector<8x256xf32>
    %57 = vector.extract_strided_slice %54 {offsets = [0, 0], sizes = [8, 256], strides = [1, 1]} : vector<32x256xf32> to vector<8x256xf32>
    %58 = arith.addf %37, %57 : vector<8x256xf32>
    %59 = vector.extract_strided_slice %52 {offsets = [8, 0], sizes = [8, 256], strides = [1, 1]} : vector<32x256xf32> to vector<8x256xf32>
    %60 = arith.addf %56, %59 : vector<8x256xf32>
    %61 = vector.extract_strided_slice %54 {offsets = [8, 0], sizes = [8, 256], strides = [1, 1]} : vector<32x256xf32> to vector<8x256xf32>
    %62 = arith.addf %58, %61 : vector<8x256xf32>
    %63 = vector.extract_strided_slice %52 {offsets = [16, 0], sizes = [8, 256], strides = [1, 1]} : vector<32x256xf32> to vector<8x256xf32>
    %64 = arith.addf %60, %63 : vector<8x256xf32>
    %65 = vector.extract_strided_slice %54 {offsets = [16, 0], sizes = [8, 256], strides = [1, 1]} : vector<32x256xf32> to vector<8x256xf32>
    %66 = arith.addf %62, %65 : vector<8x256xf32>
    %67 = vector.extract_strided_slice %52 {offsets = [24, 0], sizes = [8, 256], strides = [1, 1]} : vector<32x256xf32> to vector<8x256xf32>
    %68 = arith.addf %64, %67 : vector<8x256xf32>
    %69 = vector.extract_strided_slice %54 {offsets = [24, 0], sizes = [8, 256], strides = [1, 1]} : vector<32x256xf32> to vector<8x256xf32>
    %70 = arith.addf %66, %69 : vector<8x256xf32>
    %c0_20 = arith.constant 0 : index
    %c0_21 = arith.constant 0 : index
    %71 = vector.load %arg6[%c0_20, %c0_21] : memref<8x256xf32, #tpu.memory_space<vmem>>, vector<8x256xf32>
    %72 = arith.addf %71, %68 : vector<8x256xf32>
    %c0_22 = arith.constant 0 : index
    %c0_23 = arith.constant 0 : index
    %73 = vector.load %arg6[%c0_22, %c0_23] : memref<8x256xf32, #tpu.memory_space<vmem>>, vector<8x256xf32>
    tpu.vector_store %arg6[%c0_22, %c0_23], %72 {strides = array<i32>} : memref<8x256xf32, #tpu.memory_space<vmem>>, vector<8x256xf32>,
    %c0_24 = arith.constant 0 : index
    %c0_25 = arith.constant 0 : index
    %74 = vector.load %arg7[%c0_24, %c0_25] : memref<8x256xf32, #tpu.memory_space<vmem>>, vector<8x256xf32>
    %75 = arith.addf %74, %70 : vector<8x256xf32>
    %c0_26 = arith.constant 0 : index
    %c0_27 = arith.constant 0 : index
    %76 = vector.load %arg7[%c0_26, %c0_27] : memref<8x256xf32, #tpu.memory_space<vmem>>, vector<8x256xf32>
    tpu.vector_store %arg7[%c0_26, %c0_27], %75 {strides = array<i32>} : memref<8x256xf32, #tpu.memory_space<vmem>>, vector<8x256xf32>,
    %c0_i32_28 = arith.constant 0 : i32
    %77 = arith.cmpi eq, %arg1, %c0_i32_28 : i32
    %78 = arith.extui %77 : i1 to i32
    %c0_i32_29 = arith.constant 0 : i32
    %79 = arith.cmpi ne, %78, %c0_i32_29 : i32
    scf.if %79 {
      %c0_30 = arith.constant 0 : index
      %c0_31 = arith.constant 0 : index
      %80 = vector.load %arg6[%c0_30, %c0_31] : memref<8x256xf32, #tpu.memory_space<vmem>>, vector<8x128xf32>
      %c0_32 = arith.constant 0 : index
      %c0_33 = arith.constant 0 : index
      %81 = vector.load %arg7[%c0_32, %c0_33] : memref<8x256xf32, #tpu.memory_space<vmem>>, vector<8x128xf32>
      %c0_34 = arith.constant 0 : index
      %c128 = arith.constant 128 : index
      %82 = vector.load %arg6[%c0_34, %c128] : memref<8x256xf32, #tpu.memory_space<vmem>>, vector<8x128xf32>
      %83 = arith.addf %80, %82 : vector<8x128xf32>
      %c0_35 = arith.constant 0 : index
      %c128_36 = arith.constant 128 : index
      %84 = vector.load %arg7[%c0_35, %c128_36] : memref<8x256xf32, #tpu.memory_space<vmem>>, vector<8x128xf32>
      %85 = arith.addf %81, %84 : vector<8x128xf32>
      %c0_37 = arith.constant 0 : index
      %c0_38 = arith.constant 0 : index
      %c0_39 = arith.constant 0 : index
      %c0_40 = arith.constant 0 : index
      %86 = vector.load %arg5[%c0_37, %c0_38, %c0_39, %c0_40] : memref<1x2x8x128xf32, #tpu.memory_space<vmem>>, vector<1x1x8x128xf32>
      %87 = vector.shape_cast %86 : vector<1x1x8x128xf32> to vector<8x128xf32>
      %88 = vector.shape_cast %83 : vector<8x128xf32> to vector<1x1x8x128xf32>
      tpu.vector_store %arg5[%c0_37, %c0_38, %c0_39, %c0_40], %88 {strides = array<i32>} : memref<1x2x8x128xf32, #tpu.memory_space<vmem>>, vector<1x1x8x128xf32>,
      %c0_41 = arith.constant 0 : index
      %c1 = arith.constant 1 : index
      %c0_42 = arith.constant 0 : index
      %c0_43 = arith.constant 0 : index
      %89 = vector.load %arg5[%c0_41, %c1, %c0_42, %c0_43] : memref<1x2x8x128xf32, #tpu.memory_space<vmem>>, vector<1x1x8x128xf32>
      %90 = vector.shape_cast %89 : vector<1x1x8x128xf32> to vector<8x128xf32>
      %91 = vector.shape_cast %85 : vector<8x128xf32> to vector<1x1x8x128xf32>
      tpu.vector_store %arg5[%c0_41, %c1, %c0_42, %c0_43], %91 {strides = array<i32>} : memref<1x2x8x128xf32, #tpu.memory_space<vmem>>, vector<1x1x8x128xf32>,
    } else {
    }
    return
  }
  func.func @transform_0(%arg0: i32, %arg1: i32) -> (i32, i32) {
    %c0_i32 = arith.constant 0 : i32
    return %arg0, %arg1 : i32, i32
  }
  func.func @transform_1(%arg0: i32, %arg1: i32) -> (i32, i32) {
    %c0_i32 = arith.constant 0 : i32
    return %arg0, %arg1 : i32, i32
  }
  func.func @transform_2(%arg0: i32, %arg1: i32) -> (i32, i32) {
    %c0_i32 = arith.constant 0 : i32
    return %arg0, %arg1 : i32, i32
  }
  func.func @transform_3(%arg0: i32, %arg1: i32) -> (i32, i32, i32, i32) {
    %c0_i32 = arith.constant 0 : i32
    %c0_i32_0 = arith.constant 0 : i32
    %c0_i32_1 = arith.constant 0 : i32
    %c0_i32_2 = arith.constant 0 : i32
    return %arg0, %c0_i32, %c0_i32_0, %c0_i32_1 : i32, i32, i32, i32
  }
}

</mosaic_0001>

<llo_original>
// kernel: tpu_custom_call.1
$region0: #{tpu_custom_call.1}
  #allocation0 [shape = 'u32[]', space=smem, size = 0x4, offset = 0x4, fixed_abs, tag = 'smem constant byte address 0x4 - core index']
  #allocation1 [shape = 'u32[144,128]{1,0:T(1,128)}', space=vmem, size = 0x12000, scoped, tag = 'internal scratch']
  #allocation2 [shape = 'f32[8,256]{1,0:T(8,128)}', space=vmem, size = 0x2000, scoped, tag = 'scratch operand']
  #allocation3 [shape = 'f32[8,256]{1,0:T(8,128)}', space=vmem, size = 0x2000, scoped, tag = 'scratch operand']
  %s0 = inlined_call_operand.vmem [shape: f32[128,256], index: 0, kind: input, shape index: {}]
  %s1 = inlined_call_operand.vmem [shape: s32[128,256], index: 1, kind: input, shape index: {}]
  %s2 = inlined_call_operand.hbm [shape: f32[128,256], index: 2, kind: input, shape index: {}]
  %s3 = inlined_call_operand.hbm [shape: f32[2,2,8,128], index: 3, kind: output, shape index: {}]
  %s4 = sld [smem:[#allocation0]]
  $region57: #{tpu_custom_call.1} parent=0
    _
  %s6 = ssub.s32 1, %s4
  %s7 = scalar_select 0, %s6, %s4
  $region1: #{tpu_custom_call.1} parent=0
    #allocation4 [shape = 'u8[131072]{0}', space=vmem, size = 0x20000, scoped, tag = 'input window, operand 2']
    #allocation5 [shape = 's32[2]{0}', space=sflag, size = 0x8, scoped, tag = 'scoped memory for tpu_custom_call.1']
    #allocation6 [shape = 's32[2]{0}', space=sflag, size = 0x8, scoped, tag = 'scoped memory for tpu_custom_call.1']
    #allocation7 [shape = 'u8[16384]{0}', space=vmem, size = 0x4000, scoped, tag = 'output window, operand 0']
    %8 = vsyncpa [#allocation5], 0
    %s9 = scalar_lea.sflag [#allocation5], 1
    %10 = vsyncpa %s9, 0
    %11 = vsyncpa [#allocation6], 0
    %s12 = scalar_lea.sflag [#allocation6], 1
    %13 = vsyncpa %s12, 0
    loop: start=0, step=1, limit=4
    $region2: #{tpu_custom_call.1} parent=1 // loop_pre_header
      _
    $region3: #{tpu_custom_call.1} parent=1 // loop_header
      %s15 = sphi 0, %s19
      %p16 = scmp.ge.s32.totalorder %s15, 4
      %s22 = sphi 0, %s34
      %s23 = sphi 0, %s30
      %s24 = sphi 0, %s22
      %s25 = sphi 0, %s23
      %s26 = sphi 0, %s24
      %s27 = sphi 0, %s25
      %s39 = sphi 0, %s41
      %s42 = sphi 0, %s39
      %s43 = sphi 0, %s42
      %s59 = sphi 0, %s43
      %s67 = sphi 0, %s69
      %s70 = sphi 0, %s67
      %s71 = sphi 0, %s70
      %s87 = sphi 0, %s71
      %s95 = sphi 0, %s97
      %s98 = sphi 0, %s95
      %s99 = sphi 0, %s98
      %s115 = sphi 0, %s99
      %s121 = sphi 0, %s123
      %s124 = sphi 0, %s121
      %s125 = sphi 0, %s124
      %s141 = sphi 0, %s125
    $region4: #{tpu_custom_call.1} parent=1 // loop_header_branch
      %18 = sbr.rel (%p16) target = $region8
    $region5: #{tpu_custom_call.1} parent=1 // loop_body
      %s20 = ssub.s32 %s15, 1
      %s21 = ssub.s32 %s15, 2
      %s28 = sadd.s32 1, %s23
      %p29 = scmp.ge.s32.totalorder %s28, 1
      %s30 = scalar_select %p29, 0, %s28
      %s31 = sadd.s32 1, %s22
      %s32 = scalar_select %p29, %s31, %s22
      %p33 = scmp.ge.s32.totalorder %s32, 2
      %s34 = scalar_select %p33, 0, %s32
      %s35 = ssub.s32 %s22, %s34
      %s36 = ssub.s32 %s23, %s30
      %s37 = sor.u32 %s35, %s36
      %p38 = scmp.eq.s32.totalorder %s37, 0
      %s40 = sadd.s32 %s39, 1
      %s41 = scalar_select %p38, %s39, %s40
      %p44 = pneg %p38
      %p45 = scmp.eq.s32.totalorder %s15, 1
      %p46 = por %p44, %p45
      %p47 = scmp.ne.s32.totalorder %s39, %s42
      %p48 = scmp.eq.s32.totalorder %s15, 0
      %p49 = por %p47, %p48
      %p50 = scmp.ne.s32.totalorder %s39, %s42
      %p51 = scmp.eq.s32.totalorder %s20, 1
      %p52 = por %p50, %p51
      %p53 = scmp.ne.s32.totalorder %s42, %s43
      %p54 = scmp.eq.s32.totalorder %s20, 0
      %p55 = por %p53, %p54
      %p56 = scmp.ne.s32.totalorder %s42, %s43
      %p57 = scmp.eq.s32.totalorder %s21, 1
      %p58 = por %p56, %p57
      %p60 = scmp.ne.s32.totalorder %s43, %s59
      %p61 = scmp.eq.s32.totalorder %s21, 0
      %p62 = por %p60, %p61
      %s63 = ssub.s32 %s22, %s34
      %s64 = ssub.s32 %s23, %s30
      %s65 = sor.u32 %s63, %s64
      %p66 = scmp.eq.s32.totalorder %s65, 0
      %s68 = sadd.s32 %s67, 1
      %s69 = scalar_select %p66, %s67, %s68
      %p72 = pneg %p66
      %p73 = scmp.eq.s32.totalorder %s15, 1
      %p74 = por %p72, %p73
      %p75 = scmp.ne.s32.totalorder %s67, %s70
      %p76 = scmp.eq.s32.totalorder %s15, 0
      %p77 = por %p75, %p76
      %p78 = scmp.ne.s32.totalorder %s67, %s70
      %p79 = scmp.eq.s32.totalorder %s20, 1
      %p80 = por %p78, %p79
      %p81 = scmp.ne.s32.totalorder %s70, %s71
      %p82 = scmp.eq.s32.totalorder %s20, 0
      %p83 = por %p81, %p82
      %p84 = scmp.ne.s32.totalorder %s70, %s71
      %p85 = scmp.eq.s32.totalorder %s21, 1
      %p86 = por %p84, %p85
      %p88 = scmp.ne.s32.totalorder %s71, %s87
      %p89 = scmp.eq.s32.totalorder %s21, 0
      %p90 = por %p88, %p89
      %s91 = ssub.s32 %s22, %s34
      %s92 = ssub.s32 %s23, %s30
      %s93 = sor.u32 %s91, %s92
      %p94 = scmp.eq.s32.totalorder %s93, 0
      %s96 = sadd.s32 %s95, 1
      %s97 = scalar_select %p94, %s95, %s96
      %p100 = pneg %p94
      %p101 = scmp.eq.s32.totalorder %s15, 1
      %p102 = por %p100, %p101
      %p103 = scmp.ne.s32.totalorder %s95, %s98
      %p104 = scmp.eq.s32.totalorder %s15, 0
      %p105 = por %p103, %p104
      %p106 = scmp.ne.s32.totalorder %s95, %s98
      %p107 = scmp.eq.s32.totalorder %s20, 1
      %p108 = por %p106, %p107
      %p109 = scmp.ne.s32.totalorder %s98, %s99
      %p110 = scmp.eq.s32.totalorder %s20, 0
      %p111 = por %p109, %p110
      %p112 = scmp.ne.s32.totalorder %s98, %s99
      %p113 = scmp.eq.s32.totalorder %s21, 1
      %p114 = por %p112, %p113
      %p116 = scmp.ne.s32.totalorder %s99, %s115
      %p117 = scmp.eq.s32.totalorder %s21, 0
      %p118 = por %p116, %p117
      %s119 = ssub.s32 %s22, %s34
      %p120 = scmp.eq.s32.totalorder %s119, 0
      %s122 = sadd.s32 %s121, 1
      %s123 = scalar_select %p120, %s121, %s122
      %p126 = pneg %p120
      %p127 = scmp.eq.s32.totalorder %s15, 1
      %p128 = por %p126, %p127
      %p129 = scmp.ne.s32.totalorder %s121, %s124
      %p130 = scmp.eq.s32.totalorder %s15, 0
      %p131 = por %p129, %p130
      %p132 = scmp.ne.s32.totalorder %s121, %s124
      %p133 = scmp.eq.s32.totalorder %s20, 1
      %p134 = por %p132, %p133
      %p135 = scmp.ne.s32.totalorder %s124, %s125
      %p136 = scmp.eq.s32.totalorder %s20, 0
      %p137 = por %p135, %p136
      %p138 = scmp.ne.s32.totalorder %s124, %s125
      %p139 = scmp.eq.s32.totalorder %s21, 1
      %p140 = por %p138, %p139
      %p142 = scmp.ne.s32.totalorder %s125, %s141
      %p143 = scmp.eq.s32.totalorder %s21, 0
      %p144 = por %p142, %p143
      %p145 = scmp.le.s32.totalorder 1, %s15
      %p146 = scmp.lt.s32.totalorder %s15, 3
      %p147 = pnand %p145, %p146
      %p148 = pneg %p147
      // Predicated region
      $region9: #{tpu_custom_call.1} parent=5 // pred_check
        _
      $region10: #{tpu_custom_call.1} parent=5 // pred_check_branch
        %150 = sbr.rel (%p147) target = $region12
      $region11: #{tpu_custom_call.1} parent=5 // pred_region
        %s151 = ssub.s32 %s15, 1
      $region12: #{tpu_custom_call.1} parent=5 // pred_fallthru
        _
      %p152 = scmp.lt.s32.totalorder %s15, 2
      // Predicated region
      $region13: #{tpu_custom_call.1} parent=5 // pred_check
        %p153 = pneg %p152
      $region14: #{tpu_custom_call.1} parent=5 // pred_check_branch
        %155 = sbr.rel (%p153) target = $region16
      $region15: #{tpu_custom_call.1} parent=5 // pred_region
        // Predicated region
        $region17: #{tpu_custom_call.1} parent=15 // pred_check
          %p156 = pneg %p49
        $region18: #{tpu_custom_call.1} parent=15 // pred_check_branch
          %158 = sbr.rel (%p156) target = $region20
        $region19: #{tpu_custom_call.1} parent=15 // pred_region
          %s159 = smul.u32 8, %s22
          %s160 = smul.u32 2, %s23
          %p161 = scmp.lt.s32.totalorder %s159, 15
          %s162 = scalar_select %p161, %s159, 15
          %p163 = scmp.lt.s32.totalorder %s160, 1
          %s164 = scalar_select %p163, %s160, 1
          %s165 = smul.addr %s162, 2
          %s166 = sadd.s32 %s164, %s165
          %s167 = smul.addr %s166, 8
          %s168 = scalar_lea.vmem %s0, %s167
          %s169 = smul.u32 8, %s22
          %s170 = smul.u32 2, %s23
        $region20: #{tpu_custom_call.1} parent=15 // pred_fallthru
          _
        // Predicated region
        $region21: #{tpu_custom_call.1} parent=15 // pred_check
          %p171 = pneg %p77
        $region22: #{tpu_custom_call.1} parent=15 // pred_check_branch
          %173 = sbr.rel (%p171) target = $region24
        $region23: #{tpu_custom_call.1} parent=15 // pred_region
          %s174 = smul.u32 8, %s22
          %s175 = smul.u32 2, %s23
          %p176 = scmp.lt.s32.totalorder %s174, 15
          %s177 = scalar_select %p176, %s174, 15
          %p178 = scmp.lt.s32.totalorder %s175, 1
          %s179 = scalar_select %p178, %s175, 1
          %s180 = smul.addr %s177, 2
          %s181 = sadd.s32 %s179, %s180
          %s182 = smul.addr %s181, 8
          %s183 = scalar_lea.vmem %s1, %s182
          %s184 = smul.u32 8, %s22
          %s185 = smul.u32 2, %s23
        $region24: #{tpu_custom_call.1} parent=15 // pred_fallthru
          _
        // Predicated region
        $region25: #{tpu_custom_call.1} parent=15 // pred_check
          %p186 = pneg %p105
        $region26: #{tpu_custom_call.1} parent=15 // pred_check_branch
          %188 = sbr.rel (%p186) target = $region28
        $region27: #{tpu_custom_call.1} parent=15 // pred_region
          %s189 = sand.u32 %s95, 1
          %s190 = scalar_lea.sflag [#allocation5], %s189
          %s191 = sand.u32 %s95, 1
          %s192 = smul.addr %s191, 128
          %s193 = scalar_lea.vmem [#allocation4], %s192
          %s194 = smul.u32 8, %s22
          %s195 = smul.u32 2, %s23
          %s197 = ssub.s32 2048, 2048
          %198 = vsyncadd %s190, %s197
          %s199 = smul.addr %s194, 2
          %s200 = sadd.s32 %s195, %s199
          %s201 = smul.addr %s200, 128
          %s202 = scalar_lea.hbm %s2, %s201
          %s203 = sshll.u32 %s193, 4
          %s204 = int_to_ptr.vmem [resolvable:$true] %s203
          %209 = dma.hbm_to_vmem [thread:$0]  %s202, 2048, %s204, %s190, 256, 256, 16
        $region28: #{tpu_custom_call.1} parent=15 // pred_fallthru
          _
      $region16: #{tpu_custom_call.1} parent=5 // pred_fallthru
        _
      %p210 = scmp.le.s32.totalorder 1, %s15
      %p211 = scmp.lt.s32.totalorder %s15, 3
      %p212 = pnand %p210, %p211
      %p213 = pneg %p212
      // Predicated region
      $region29: #{tpu_custom_call.1} parent=5 // pred_check
        _
      $region30: #{tpu_custom_call.1} parent=5 // pred_check_branch
        %215 = sbr.rel (%p212) target = $region32
      $region31: #{tpu_custom_call.1} parent=5 // pred_region
        %s216 = ssub.s32 %s15, 1
        %s217 = sand.u32 %s98, 1
        %s218 = scalar_lea.sflag [#allocation5], %s217
        %s219 = sand.u32 %s98, 1
        %s220 = smul.addr %s219, 128
        %s221 = scalar_lea.vmem [#allocation4], %s220
        // Predicated region
        $region33: #{tpu_custom_call.1} parent=31 // pred_check
          %p222 = pneg %p111
        $region34: #{tpu_custom_call.1} parent=31 // pred_check_branch
          %224 = sbr.rel (%p222) target = $region36
        $region35: #{tpu_custom_call.1} parent=31 // pred_region
          %225 = dma.done %s218, 2048
        $region36: #{tpu_custom_call.1} parent=31 // pred_fallthru
          _
        %s226 = smul.u32 8, %s24
        %s227 = smul.u32 2, %s25
        %p228 = scmp.lt.s32.totalorder %s226, 15
        %s229 = scalar_select %p228, %s226, 15
        %p230 = scmp.lt.s32.totalorder %s227, 1
        %s231 = scalar_select %p230, %s227, 1
        %s232 = smul.addr %s229, 2
        %s233 = sadd.s32 %s231, %s232
        %s234 = smul.addr %s233, 8
        %s235 = scalar_lea.vmem %s0, %s234
        %p236 = pneg %p55
        %p237 = pneg %p52
        %s238 = smul.u32 8, %s24
        %s239 = smul.u32 2, %s25
        %p240 = scmp.lt.s32.totalorder %s238, 15
        %s241 = scalar_select %p240, %s238, 15
        %p242 = scmp.lt.s32.totalorder %s239, 1
        %s243 = scalar_select %p242, %s239, 1
        %s244 = smul.addr %s241, 2
        %s245 = sadd.s32 %s243, %s244
        %s246 = smul.addr %s245, 8
        %s247 = scalar_lea.vmem %s1, %s246
        %p248 = pneg %p83
        %p249 = pneg %p80
        %s250 = sand.u32 %s98, 1
        %s251 = scalar_lea.sflag [#allocation5], %s250
        %s252 = sand.u32 %s98, 1
        %s253 = smul.addr %s252, 128
        %s254 = scalar_lea.vmem [#allocation4], %s253
        %p255 = pneg %p111
        %p256 = pneg %p108
        %p257 = pneg %p137
        %p258 = pneg %p134
        %s259 = sand.u32 %s124, 1
        %s260 = scalar_lea.sflag [#allocation6], %s259
        %s261 = sand.u32 %s124, 1
        %s262 = smul.addr %s261, 16
        %s263 = scalar_lea.vmem [#allocation7], %s262
        %s264 = smul.u32 8, %s24
        %s265 = smul.u32 2, %s25
        %p266 = scmp.lt.s32.totalorder %s264, 15
        %s267 = scalar_select %p266, %s264, 15
        %p268 = scmp.lt.s32.totalorder %s265, 1
        %s269 = scalar_select %p268, %s265, 1
        %s270 = smul.addr %s267, 2
        %s271 = sadd.s32 %s269, %s270
        %s272 = smul.addr %s271, 8
        %s273 = scalar_lea.vmem %s0, %s272
        %s274 = smul.u32 8, %s24
        %s275 = smul.u32 2, %s25
        %s276 = smul.u32 8, %s24
        %s277 = smul.u32 2, %s25
        %p278 = scmp.lt.s32.totalorder %s276, 15
        %s279 = scalar_select %p278, %s276, 15
        %p280 = scmp.lt.s32.totalorder %s277, 1
        %s281 = scalar_select %p280, %s277, 1
        %s282 = smul.addr %s279, 2
        %s283 = sadd.s32 %s281, %s282
        %s284 = smul.addr %s283, 8
        %s285 = scalar_lea.vmem %s1, %s284
        %s286 = smul.u32 8, %s24
        %s287 = smul.u32 2, %s25
        %s288 = smul.u32 8, %s24
        %s289 = smul.u32 2, %s25
        %p290 = scmp.eq.s32.totalorder %s25, 0
        // Predicated region
        $region37: #{tpu_custom_call.1} parent=31 // pred_check
          %p291 = pneg %p290
        $region38: #{tpu_custom_call.1} parent=31 // pred_check_branch
          %293 = sbr.rel (%p291) target = $region40
        $region39: #{tpu_custom_call.1} parent=31 // pred_region
          %294 = vst [vmem:[#allocation2] sm:$0xff] 0.0
          %295 = vst [vmem:[#allocation2 + $0x8] sm:$0xff] 0.0
          %296 = vst [vmem:[#allocation3] sm:$0xff] 0.0
          %297 = vst [vmem:[#allocation3 + $0x8] sm:$0xff] 0.0
        $region40: #{tpu_custom_call.1} parent=31 // pred_fallthru
          _
        %v298 = vld [vmem:[%s273] sm:$0xff]
        %v299 = vld [vmem:[%s273 + $0x8] sm:$0xff]
        %v300 = vld [vmem:[%s273 + $0x10] sm:$0xff]
        %v301 = vld [vmem:[%s273 + $0x18] sm:$0xff]
        %v302 = vld [vmem:[%s273 + $0x20] sm:$0xff]
        %v303 = vld [vmem:[%s273 + $0x28] sm:$0xff]
        %v304 = vld [vmem:[%s273 + $0x30] sm:$0xff]
        %v305 = vld [vmem:[%s273 + $0x38] sm:$0xff]
        %v306 = vmul.f32 %v298, 2.0
        %v307 = vmul.f32 %v299, 2.0
        %v308 = vmul.f32 %v300, 2.0
        %v309 = vmul.f32 %v301, 2.0
        %v310 = vmul.f32 %v302, 2.0
        %v311 = vmul.f32 %v303, 2.0
        %v312 = vmul.f32 %v304, 2.0
        %v313 = vmul.f32 %v305, 2.0
        %v314 = vld [vmem:[%s221] sm:$0xff]
        %v315 = vld [vmem:[%s221 + $0x8] sm:$0xff]
        %v316 = vld [vmem:[%s221 + $0x10] sm:$0xff]
        %v317 = vld [vmem:[%s221 + $0x18] sm:$0xff]
        %v318 = vld [vmem:[%s221 + $0x20] sm:$0xff]
        %v319 = vld [vmem:[%s221 + $0x28] sm:$0xff]
        %v320 = vld [vmem:[%s221 + $0x30] sm:$0xff]
        %v321 = vld [vmem:[%s221 + $0x38] sm:$0xff]
        %v322 = vld [vmem:[%s285] sm:$0xff]
        %v323 = vld [vmem:[%s285 + $0x8] sm:$0xff]
        %v324 = vld [vmem:[%s285 + $0x10] sm:$0xff]
        %v325 = vld [vmem:[%s285 + $0x18] sm:$0xff]
        %v326 = vld [vmem:[%s285 + $0x20] sm:$0xff]
        %v327 = vld [vmem:[%s285 + $0x28] sm:$0xff]
        %v328 = vld [vmem:[%s285 + $0x30] sm:$0xff]
        %v329 = vld [vmem:[%s285 + $0x38] sm:$0xff]
        %vm330 = vcmp.ne.s32.totalorder %v322, 0
        %vm331 = vcmp.ne.s32.totalorder %v323, 0
        %vm332 = vcmp.ne.s32.totalorder %v324, 0
        %vm333 = vcmp.ne.s32.totalorder %v325, 0
        %vm334 = vcmp.ne.s32.totalorder %v326, 0
        %vm335 = vcmp.ne.s32.totalorder %v327, 0
        %vm336 = vcmp.ne.s32.totalorder %v328, 0
        %vm337 = vcmp.ne.s32.totalorder %v329, 0
        %v338 = vsub.f32 %v306, %v314
        %v339 = vsub.f32 %v307, %v315
        %v340 = vsub.f32 %v308, %v316
        %v341 = vsub.f32 %v309, %v317
        %v342 = vsub.f32 %v310, %v318
        %v343 = vsub.f32 %v311, %v319
        %v344 = vsub.f32 %v312, %v320
        %v345 = vsub.f32 %v313, %v321
        %v346 = vand.u32 2147483647, %v338
        %v347 = vand.u32 2147483647, %v339
        %v348 = vand.u32 2147483647, %v340
        %v349 = vand.u32 2147483647, %v341
        %v350 = vand.u32 2147483647, %v342
        %v351 = vand.u32 2147483647, %v343
        %v352 = vand.u32 2147483647, %v344
        %v353 = vand.u32 2147483647, %v345
        %v354 = vmin.f32 %v346, 0.5
        %v355 = vmin.f32 %v347, 0.5
        %v356 = vmin.f32 %v348, 0.5
        %v357 = vmin.f32 %v349, 0.5
        %v358 = vmin.f32 %v350, 0.5
        %v359 = vmin.f32 %v351, 0.5
        %v360 = vmin.f32 %v352, 0.5
        %v361 = vmin.f32 %v353, 0.5
        %v362 = vadd.f32 %v346, %v346
        %v363 = vadd.f32 %v347, %v347
        %v364 = vadd.f32 %v348, %v348
        %v365 = vadd.f32 %v349, %v349
        %v366 = vadd.f32 %v350, %v350
        %v367 = vadd.f32 %v351, %v351
        %v368 = vadd.f32 %v352, %v352
        %v369 = vadd.f32 %v353, %v353
        %v370 = vsub.f32 %v362, %v354
        %v371 = vsub.f32 %v363, %v355
        %v372 = vsub.f32 %v364, %v356
        %v373 = vsub.f32 %v365, %v357
        %v374 = vsub.f32 %v366, %v358
        %v375 = vsub.f32 %v367, %v359
        %v376 = vsub.f32 %v368, %v360
        %v377 = vsub.f32 %v369, %v361
        %v378 = vmul.f32 %v354, %v370
        %v379 = vmul.f32 %v355, %v371
        %v380 = vmul.f32 %v356, %v372
        %v381 = vmul.f32 %v357, %v373
        %v382 = vmul.f32 %v358, %v374
        %v383 = vmul.f32 %v359, %v375
        %v384 = vmul.f32 %v360, %v376
        %v385 = vmul.f32 %v361, %v377
        %v386 = vsel %vm330, %v378, 0.0
        %v387 = vsel %vm331, %v379, 0.0
        %v388 = vsel %vm332, %v380, 0.0
        %v389 = vsel %vm333, %v381, 0.0
        %v390 = vsel %vm334, %v382, 0.0
        %v391 = vsel %vm335, %v383, 0.0
        %v392 = vsel %vm336, %v384, 0.0
        %v393 = vsel %vm337, %v385, 0.0
        %v394 = vsel %vm330, 1, 0
        %v395 = vsel %vm331, 1, 0
        %v396 = vsel %vm332, 1, 0
        %v397 = vsel %vm333, 1, 0
        %v398 = vsel %vm334, 1, 0
        %v399 = vsel %vm335, 1, 0
        %v400 = vsel %vm336, 1, 0
        %v401 = vsel %vm337, 1, 0
        %v402 = vcvt.s32.f32 %v394
        %v403 = vcvt.s32.f32 %v395
        %v404 = vcvt.s32.f32 %v396
        %v405 = vcvt.s32.f32 %v397
        %v406 = vcvt.s32.f32 %v398
        %v407 = vcvt.s32.f32 %v399
        %v408 = vcvt.s32.f32 %v400
        %v409 = vcvt.s32.f32 %v401
        %v410 = vadd.f32 %v386, 0.0
        %v411 = vadd.f32 %v387, 0.0
        %v412 = vadd.f32 %v402, 0.0
        %v413 = vadd.f32 %v403, 0.0
        %v414 = vadd.f32 %v410, %v388
        %v415 = vadd.f32 %v411, %v389
        %v416 = vadd.f32 %v412, %v404
        %v417 = vadd.f32 %v413, %v405
        %v418 = vadd.f32 %v414, %v390
        %v419 = vadd.f32 %v415, %v391
        %v420 = vadd.f32 %v416, %v406
        %v421 = vadd.f32 %v417, %v407
        %v422 = vadd.f32 %v418, %v392
        %v423 = vadd.f32 %v419, %v393
        %v424 = vadd.f32 %v420, %v408
        %v425 = vadd.f32 %v421, %v409
        %v426 = vld [vmem:[%s273 + $0x40] sm:$0xff]
        %v427 = vld [vmem:[%s273 + $0x48] sm:$0xff]
        %v428 = vld [vmem:[%s273 + $0x50] sm:$0xff]
        %v429 = vld [vmem:[%s273 + $0x58] sm:$0xff]
        %v430 = vld [vmem:[%s273 + $0x60] sm:$0xff]
        %v431 = vld [vmem:[%s273 + $0x68] sm:$0xff]
        %v432 = vld [vmem:[%s273 + $0x70] sm:$0xff]
        %v433 = vld [vmem:[%s273 + $0x78] sm:$0xff]
        %v434 = vmul.f32 %v426, 2.0
        %v435 = vmul.f32 %v427, 2.0
        %v436 = vmul.f32 %v428, 2.0
        %v437 = vmul.f32 %v429, 2.0
        %v438 = vmul.f32 %v430, 2.0
        %v439 = vmul.f32 %v431, 2.0
        %v440 = vmul.f32 %v432, 2.0
        %v441 = vmul.f32 %v433, 2.0
        %v442 = vld [vmem:[%s221 + $0x40] sm:$0xff]
        %v443 = vld [vmem:[%s221 + $0x48] sm:$0xff]
        %v444 = vld [vmem:[%s221 + $0x50] sm:$0xff]
        %v445 = vld [vmem:[%s221 + $0x58] sm:$0xff]
        %v446 = vld [vmem:[%s221 + $0x60] sm:$0xff]
        %v447 = vld [vmem:[%s221 + $0x68] sm:$0xff]
        %v448 = vld [vmem:[%s221 + $0x70] sm:$0xff]
        %v449 = vld [vmem:[%s221 + $0x78] sm:$0xff]
        %v450 = vld [vmem:[%s285 + $0x40] sm:$0xff]
        %v451 = vld [vmem:[%s285 + $0x48] sm:$0xff]
        %v452 = vld [vmem:[%s285 + $0x50] sm:$0xff]
        %v453 = vld [vmem:[%s285 + $0x58] sm:$0xff]
        %v454 = vld [vmem:[%s285 + $0x60] sm:$0xff]
        %v455 = vld [vmem:[%s285 + $0x68] sm:$0xff]
        %v456 = vld [vmem:[%s285 + $0x70] sm:$0xff]
        %v457 = vld [vmem:[%s285 + $0x78] sm:$0xff]
        %vm458 = vcmp.ne.s32.totalorder %v450, 0
        %vm459 = vcmp.ne.s32.totalorder %v451, 0
        %vm460 = vcmp.ne.s32.totalorder %v452, 0
        %vm461 = vcmp.ne.s32.totalorder %v453, 0
        %vm462 = vcmp.ne.s32.totalorder %v454, 0
        %vm463 = vcmp.ne.s32.totalorder %v455, 0
        %vm464 = vcmp.ne.s32.totalorder %v456, 0
        %vm465 = vcmp.ne.s32.totalorder %v457, 0
        %v466 = vsub.f32 %v434, %v442
        %v467 = vsub.f32 %v435, %v443
        %v468 = vsub.f32 %v436, %v444
        %v469 = vsub.f32 %v437, %v445
        %v470 = vsub.f32 %v438, %v446
        %v471 = vsub.f32 %v439, %v447
        %v472 = vsub.f32 %v440, %v448
        %v473 = vsub.f32 %v441, %v449
        %v474 = vand.u32 2147483647, %v466
        %v475 = vand.u32 2147483647, %v467
        %v476 = vand.u32 2147483647, %v468
        %v477 = vand.u32 2147483647, %v469
        %v478 = vand.u32 2147483647, %v470
        %v479 = vand.u32 2147483647, %v471
        %v480 = vand.u32 2147483647, %v472
        %v481 = vand.u32 2147483647, %v473
        %v482 = vmin.f32 %v474, 0.5
        %v483 = vmin.f32 %v475, 0.5
        %v484 = vmin.f32 %v476, 0.5
        %v485 = vmin.f32 %v477, 0.5
        %v486 = vmin.f32 %v478, 0.5
        %v487 = vmin.f32 %v479, 0.5
        %v488 = vmin.f32 %v480, 0.5
        %v489 = vmin.f32 %v481, 0.5
        %v490 = vadd.f32 %v474, %v474
        %v491 = vadd.f32 %v475, %v475
        %v492 = vadd.f32 %v476, %v476
        %v493 = vadd.f32 %v477, %v477
        %v494 = vadd.f32 %v478, %v478
        %v495 = vadd.f32 %v479, %v479
        %v496 = vadd.f32 %v480, %v480
        %v497 = vadd.f32 %v481, %v481
        %v498 = vsub.f32 %v490, %v482
        %v499 = vsub.f32 %v491, %v483
        %v500 = vsub.f32 %v492, %v484
        %v501 = vsub.f32 %v493, %v485
        %v502 = vsub.f32 %v494, %v486
        %v503 = vsub.f32 %v495, %v487
        %v504 = vsub.f32 %v496, %v488
        %v505 = vsub.f32 %v497, %v489
        %v506 = vmul.f32 %v482, %v498
        %v507 = vmul.f32 %v483, %v499
        %v508 = vmul.f32 %v484, %v500
        %v509 = vmul.f32 %v485, %v501
        %v510 = vmul.f32 %v486, %v502
        %v511 = vmul.f32 %v487, %v503
        %v512 = vmul.f32 %v488, %v504
        %v513 = vmul.f32 %v489, %v505
        %v514 = vsel %vm458, %v506, 0.0
        %v515 = vsel %vm459, %v507, 0.0
        %v516 = vsel %vm460, %v508, 0.0
        %v517 = vsel %vm461, %v509, 0.0
        %v518 = vsel %vm462, %v510, 0.0
        %v519 = vsel %vm463, %v511, 0.0
        %v520 = vsel %vm464, %v512, 0.0
        %v521 = vsel %vm465, %v513, 0.0
        %v522 = vsel %vm458, 1, 0
        %v523 = vsel %vm459, 1, 0
        %v524 = vsel %vm460, 1, 0
        %v525 = vsel %vm461, 1, 0
        %v526 = vsel %vm462, 1, 0
        %v527 = vsel %vm463, 1, 0
        %v528 = vsel %vm464, 1, 0
        %v529 = vsel %vm465, 1, 0
        %v530 = vcvt.s32.f32 %v522
        %v531 = vcvt.s32.f32 %v523
        %v532 = vcvt.s32.f32 %v524
        %v533 = vcvt.s32.f32 %v525
        %v534 = vcvt.s32.f32 %v526
        %v535 = vcvt.s32.f32 %v527
        %v536 = vcvt.s32.f32 %v528
        %v537 = vcvt.s32.f32 %v529
        %v538 = vadd.f32 %v422, %v514
        %v539 = vadd.f32 %v423, %v515
        %v540 = vadd.f32 %v424, %v530
        %v541 = vadd.f32 %v425, %v531
        %v542 = vadd.f32 %v538, %v516
        %v543 = vadd.f32 %v539, %v517
        %v544 = vadd.f32 %v540, %v532
        %v545 = vadd.f32 %v541, %v533
        %v546 = vadd.f32 %v542, %v518
        %v547 = vadd.f32 %v543, %v519
        %v548 = vadd.f32 %v544, %v534
        %v549 = vadd.f32 %v545, %v535
        %v550 = vadd.f32 %v546, %v520
        %v551 = vadd.f32 %v547, %v521
        %v552 = vadd.f32 %v548, %v536
        %v553 = vadd.f32 %v549, %v537
        %v554 = vld [vmem:[#allocation2] sm:$0xff]
        %v555 = vld [vmem:[#allocation2 + $0x8] sm:$0xff]
        %v556 = vadd.f32 %v554, %v550
        %v557 = vadd.f32 %v555, %v551
        %558 = vst [vmem:[#allocation2] sm:$0xff] %v556
        %559 = vst [vmem:[#allocation2 + $0x8] sm:$0xff] %v557
        %v560 = vld [vmem:[#allocation3] sm:$0xff]
        %v561 = vld [vmem:[#allocation3 + $0x8] sm:$0xff]
        %v562 = vadd.f32 %v560, %v552
        %v563 = vadd.f32 %v561, %v553
        %564 = vst [vmem:[#allocation3] sm:$0xff] %v562
        %565 = vst [vmem:[#allocation3 + $0x8] sm:$0xff] %v563
        // Predicated region
        $region41: #{tpu_custom_call.1} parent=31 // pred_check
          %p566 = pneg %p290
        $region42: #{tpu_custom_call.1} parent=31 // pred_check_branch
          %568 = sbr.rel (%p566) target = $region44
        $region43: #{tpu_custom_call.1} parent=31 // pred_region
          %v569 = vld [vmem:[#allocation2] sm:$0xff]
          %v570 = vld [vmem:[#allocation3] sm:$0xff]
          %v571 = vld [vmem:[#allocation2 + $0x8] sm:$0xff]
          %v572 = vadd.f32 %v569, %v571
          %v573 = vld [vmem:[#allocation3 + $0x8] sm:$0xff]
          %v574 = vadd.f32 %v570, %v573
          %575 = vst [vmem:[%s263] sm:$0xff] %v572
          %s576 = scalar_lea.vmem %s263, 8 [#allocation7]
          %577 = vst [vmem:[%s576] sm:$0xff] %v574
        $region44: #{tpu_custom_call.1} parent=31 // pred_fallthru
          _
        %s578 = sand.u32 %s124, 1
        %s579 = scalar_lea.sflag [#allocation6], %s578
        %s580 = sand.u32 %s124, 1
        %s581 = smul.addr %s580, 16
        %s582 = scalar_lea.vmem [#allocation7], %s581
        // Predicated region
        $region45: #{tpu_custom_call.1} parent=31 // pred_check
          %p583 = pneg %p134
        $region46: #{tpu_custom_call.1} parent=31 // pred_check_branch
          %585 = sbr.rel (%p583) target = $region48
        $region47: #{tpu_custom_call.1} parent=31 // pred_region
          %s587 = ssub.s32 256, 256
          %588 = vsyncadd %s579, %s587
          %s589 = smul.addr %s24, 2
          %s590 = smul.addr %s589, 128
          %s591 = scalar_lea.hbm %s3, %s590
          %s592 = sshll.u32 %s582, 4
          %s593 = int_to_ptr.vmem [resolvable:$true] %s592
          %598 = dma.vmem_to_hbm [thread:$0]  %s593, 256, %s591, %s579, 128, 128, 8
        $region48: #{tpu_custom_call.1} parent=31 // pred_fallthru
          _
      $region32: #{tpu_custom_call.1} parent=5 // pred_fallthru
        _
      %p599 = scmp.le.s32.totalorder 2, %s15
      // Predicated region
      $region49: #{tpu_custom_call.1} parent=5 // pred_check
        %p600 = pneg %p599
      $region50: #{tpu_custom_call.1} parent=5 // pred_check_branch
        %602 = sbr.rel (%p600) target = $region52
      $region51: #{tpu_custom_call.1} parent=5 // pred_region
        %s603 = ssub.s32 %s15, 2
        // Predicated region
        $region53: #{tpu_custom_call.1} parent=51 // pred_check
          %p604 = pneg %p140
        $region54: #{tpu_custom_call.1} parent=51 // pred_check_branch
          %606 = sbr.rel (%p604) target = $region56
        $region55: #{tpu_custom_call.1} parent=51 // pred_region
          %s607 = sand.u32 %s125, 1
          %s608 = scalar_lea.sflag [#allocation6], %s607
          %s609 = sand.u32 %s125, 1
          %s610 = smul.addr %s609, 16
          %s611 = scalar_lea.vmem [#allocation7], %s610
          %612 = dma.done %s608, 256
        $region56: #{tpu_custom_call.1} parent=51 // pred_fallthru
          _
      $region52: #{tpu_custom_call.1} parent=5 // pred_fallthru
        _
    $region6: #{tpu_custom_call.1} parent=1 // loop_footer
      %s19 = sadd.s32 1, %s15
    $region7: #{tpu_custom_call.1} parent=1 // loop_footer_branch
      %14 = sbr.rel target = $region3
    $region8: #{tpu_custom_call.1} parent=1 // loop_exit
      _
    %613 = vsyncpa [#allocation5], 1
    %s614 = scalar_lea.sflag [#allocation5], 1
    %615 = vsyncpa %s614, 1
    %616 = vsyncpa [#allocation6], 1
    %s617 = scalar_lea.sflag [#allocation6], 1
    %618 = vsyncpa %s617, 1

</llo_original>
